<compile_context>
chip_gen: v7x
topology: tpu7x:2x2x1
jax: 0.10.0
libtpu: 0.0.40
codegen_flags: <defaults>
</compile_context>

<pallas_src>
import functools

import jax
import jax.numpy as jnp
import numpy as np
from jax.experimental import pallas as pl
from jax.experimental.pallas import tpu as pltpu

_SUBLANE = 8
_MAX_TILE = 2048


def _round_up(n, m):
    return ((n + m - 1) // m) * m


def _tensorcores_per_chip():
    """Best-effort chip-generation probe; only used to decide grid splitting."""
    try:
        kind = jax.devices()[0].device_kind.lower()
        if "v7" in kind or "7x" in kind:
            return 2
    except Exception:
        pass
    return 1


def _mlp_kernel(x_ref, w1_ref, b1_ref, w2_ref, b2_ref, w3_ref, b3_ref,
                w4_ref, b4_ref, o_ref, *, use_bf16):
    """One batch-tile of the (sigmoid-folded) 4-layer MLP, fully inside VMEM."""

    def dot(a, w_ref):
        if use_bf16:
            a = a.astype(jnp.bfloat16)   # weights were pre-cast once in the wrapper
        return jnp.dot(a, w_ref[...], preferred_element_type=jnp.float32)

    x = x_ref[...]
    t1 = jnp.tanh(dot(x, w1_ref) + b1_ref[...])
    t2 = jnp.tanh(dot(t1, w2_ref) + b2_ref[...])
    t3 = jnp.tanh(dot(t2, w3_ref) + b3_ref[...])
    o_ref[...] = (dot(t3, w4_ref) + b4_ref[...]).astype(o_ref.dtype)


def _fold_sigmoid_params(p, use_bf16):
    """Absorb sigmoid(z) = 0.5*(tanh(0.5 z)+1) affine terms into weights/biases.

    With t_l = tanh(.) and h_l = 0.5 t_l + 0.5:
      layer1: t1 = tanh(x (0.5 W1) + 0.5 b1)
      layer2: t2 = tanh(t1 (0.25 W2) + 0.5 b2 + 0.25 colsum(W2))        (same for 3)
      layer4: y  = t3 (0.5 W4) + b4 + 0.5 colsum(W4)
    Exact algebra; tiny one-time transform of 32x32 weights (hoistable under jit).
    """
    w1, b1, w2, b2 = p["w1"], p["b1"], p["w2"], p["b2"]
    w3, b3, w4, b4 = p["w3"], p["b3"], p["w4"], p["b4"]
    fw1, fb1 = 0.5 * w1, 0.5 * b1
    fw2, fb2 = 0.25 * w2, 0.5 * b2 + 0.25 * jnp.sum(w2, axis=0, keepdims=True)
    fw3, fb3 = 0.25 * w3, 0.5 * b3 + 0.25 * jnp.sum(w3, axis=0, keepdims=True)
    fw4, fb4 = 0.5 * w4, b4 + 0.5 * jnp.sum(w4, axis=0, keepdims=True)
    if use_bf16:
        fw1, fw2, fw3, fw4 = (w.astype(jnp.bfloat16) for w in (fw1, fw2, fw3, fw4))
    return fw1, fb1, fw2, fb2, fw3, fb3, fw4, fb4


def student_network_forward(x, params, *, batch_tile=None, use_bf16_matmul=False,
                            out_dtype=jnp.float32):
    """x: [B, D_in] float32. params: transposed-to-[in,out] weights + (1,out) biases."""
    B, D_in = x.shape
    H = params["w1"].shape[1]
    D_out = params["w4"].shape[1]

    if batch_tile is None:
        n_tc = _tensorcores_per_chip()
        if n_tc > 1 and B > _SUBLANE:
            # v7x: keep >=2 "parallel" grid steps so both TensorCores get work.
            batch_tile = min(_MAX_TILE,
                             max(_SUBLANE, _round_up(pl.cdiv(B, n_tc), _SUBLANE)))
        else:
            # v5e/v6e (1 TC): single grid step whenever the batch fits one tile.
            batch_tile = min(_MAX_TILE, max(_SUBLANE, _round_up(B, _SUBLANE)))
    else:
        batch_tile = max(_SUBLANE, _round_up(batch_tile, _SUBLANE))

    grid_m = pl.cdiv(B, batch_tile)   # ragged tail block handled by Pallas (no x pad)

    fw1, fb1, fw2, fb2, fw3, fb3, fw4, fb4 = _fold_sigmoid_params(
        params, use_bf16_matmul)

    full = lambda i: (0, 0)      # weights/biases: same block every step (resident)
    tiled = lambda i: (i, 0)     # x / y: tile over batch rows

    kernel = functools.partial(_mlp_kernel, use_bf16=use_bf16_matmul)

    return pl.pallas_call(
        kernel,
        out_shape=jax.ShapeDtypeStruct((B, D_out), out_dtype),
        grid_spec=pltpu.PrefetchScalarGridSpec(
            num_scalar_prefetch=0,
            grid=(grid_m,),
            in_specs=[
                pl.BlockSpec((batch_tile, D_in), tiled),   # x
                pl.BlockSpec((D_in, H), full),             # w1
                pl.BlockSpec((1, H), full),                # b1
                pl.BlockSpec((H, H), full),                # w2
                pl.BlockSpec((1, H), full),                # b2
                pl.BlockSpec((H, H), full),                # w3
                pl.BlockSpec((1, H), full),                # b3
                pl.BlockSpec((H, D_out), full),            # w4
                pl.BlockSpec((1, D_out), full),            # b4
            ],
            out_specs=pl.BlockSpec((batch_tile, D_out), tiled),
        ),
        compiler_params=pltpu.CompilerParams(
            dimension_semantics=("parallel",)),
    )(x, fw1, fb1, fw2, fb2, fw3, fb3, fw4, fb4)


def xavier_uniform(key, fan_in, fan_out, dtype=jnp.float32):
    """torch.nn.init.xavier_uniform_ bound for a (fan_out, fan_in) weight,
    returned already transposed to (fan_in, fan_out)."""
    bound = float(np.sqrt(6.0 / (fan_in + fan_out)))
    return jax.random.uniform(key, (fan_in, fan_out), dtype=dtype,
                              minval=-bound, maxval=bound)


def init_student_params(key, D_in, H, D_out):
    k1, k2, k3, k4 = jax.random.split(key, 4)
    return {
        "w1": xavier_uniform(k1, D_in, H),
        "b1": jnp.zeros((1, H), jnp.float32),
        "w2": xavier_uniform(k2, H, H),
        "b2": jnp.zeros((1, H), jnp.float32),
        "w3": xavier_uniform(k3, H, H),
        "b3": jnp.zeros((1, H), jnp.float32),
        "w4": xavier_uniform(k4, H, D_out),
        "b4": jnp.zeros((1, D_out), jnp.float32),
    }


def reference_forward(x, p):
    h1 = jax.nn.sigmoid(x @ p["w1"] + p["b1"])
    h2 = jax.nn.sigmoid(h1 @ p["w2"] + p["b2"])
    h3 = jax.nn.sigmoid(h2 @ p["w3"] + p["b3"])
    return h3 @ p["w4"] + p["b4"]


if __name__ == "__main__":
    D_in, H, D_out = 32, 32, 16

    key = jax.random.PRNGKey(0)
    kx1, kx2, kp = jax.random.split(key, 3)
    params = init_student_params(kp, D_in, H, D_out)

    fwd = jax.jit(student_network_forward)

    # Small batch (single grid step, exact tile).
    x_small = jax.random.normal(kx1, (8, D_in), dtype=jnp.float32)
    y_small = jax.block_until_ready(fwd(x_small, params))
    np.testing.assert_allclose(np.asarray(y_small),
                               np.asarray(reference_forward(x_small, params)),
                               rtol=1e-4, atol=1e-5)

    # Ragged batch (exercises cdiv grid + Pallas-handled partial tail block, no pad).
    x_ragged = jax.random.normal(kx2, (300, D_in), dtype=jnp.float32)
    y_ragged = jax.block_until_ready(fwd(x_ragged, params))
    np.testing.assert_allclose(np.asarray(y_ragged),
                               np.asarray(reference_forward(x_ragged, params)),
                               rtol=1e-4, atol=1e-5)

    print("KERNEL_OK")
</pallas_src>

<mosaic_0001>
module attributes {stable_mosaic.version = 11 : i64} {
  func.func @_mlp_kernel(%arg0: i32, %arg1: memref<8x32xf32, #tpu.memory_space<vmem>>, %arg2: memref<32x32xf32, #tpu.memory_space<vmem>>, %arg3: memref<1x32xf32, #tpu.memory_space<vmem>>, %arg4: memref<32x32xf32, #tpu.memory_space<vmem>>, %arg5: memref<1x32xf32, #tpu.memory_space<vmem>>, %arg6: memref<32x32xf32, #tpu.memory_space<vmem>>, %arg7: memref<1x32xf32, #tpu.memory_space<vmem>>, %arg8: memref<32x16xf32, #tpu.memory_space<vmem>>, %arg9: memref<1x16xf32, #tpu.memory_space<vmem>>, %arg10: memref<8x16xf32, #tpu.memory_space<vmem>>) attributes {dimension_semantics = [#tpu.dimension_semantics<parallel>], iteration_bounds = array<i64: 1>, scalar_prefetch = 0 : i64, scratch_operands = 0 : i64, tpu.core_type = #tpu.core_type<tc>, window_params = [{transform_indices = @transform_0, window_bounds = array<i64: 8, 32>}, {pipeline_mode = #tpu.pipeline_mode<synchronous>, transform_indices = @transform_1, window_bounds = array<i64: 32, 32>}, {pipeline_mode = #tpu.pipeline_mode<synchronous>, transform_indices = @transform_2, window_bounds = array<i64: 1, 32>}, {pipeline_mode = #tpu.pipeline_mode<synchronous>, transform_indices = @transform_3, window_bounds = array<i64: 32, 32>}, {pipeline_mode = #tpu.pipeline_mode<synchronous>, transform_indices = @transform_4, window_bounds = array<i64: 1, 32>}, {pipeline_mode = #tpu.pipeline_mode<synchronous>, transform_indices = @transform_5, window_bounds = array<i64: 32, 32>}, {pipeline_mode = #tpu.pipeline_mode<synchronous>, transform_indices = @transform_6, window_bounds = array<i64: 1, 32>}, {pipeline_mode = #tpu.pipeline_mode<synchronous>, transform_indices = @transform_7, window_bounds = array<i64: 32, 16>}, {pipeline_mode = #tpu.pipeline_mode<synchronous>, transform_indices = @transform_8, window_bounds = array<i64: 1, 16>}, {transform_indices = @transform_9, window_bounds = array<i64: 8, 16>}]} {
    %c0 = arith.constant 0 : index
    %c0_0 = arith.constant 0 : index
    %0 = vector.load %arg1[%c0, %c0_0] : memref<8x32xf32, #tpu.memory_space<vmem>>, vector<8x32xf32>
    %c0_1 = arith.constant 0 : index
    %c0_2 = arith.constant 0 : index
    %1 = vector.load %arg2[%c0_1, %c0_2] : memref<32x32xf32, #tpu.memory_space<vmem>>, vector<32x32xf32>
    %cst = arith.constant dense<0.000000e+00> : vector<8x32xf32>
    %2 = tpu.matmul %0, %1, %cst {dimension_numbers = #tpu.dot_dimension_numbers<[1], [0], [0], [1], [0, 0, 1, 1], [], []>} : vector<8x32xf32>, vector<32x32xf32>, vector<8x32xf32> -> vector<8x32xf32>
    %c0_3 = arith.constant 0 : index
    %c0_4 = arith.constant 0 : index
    %3 = vector.load %arg3[%c0_3, %c0_4] : memref<1x32xf32, #tpu.memory_space<vmem>>, vector<1x32xf32>
    %4 = vector.broadcast %3 : vector<1x32xf32> to vector<8x32xf32>
    %5 = arith.addf %2, %4 : vector<8x32xf32>
    %6 = math.tanh %5 : vector<8x32xf32>
    %c0_5 = arith.constant 0 : index
    %c0_6 = arith.constant 0 : index
    %7 = vector.load %arg4[%c0_5, %c0_6] : memref<32x32xf32, #tpu.memory_space<vmem>>, vector<32x32xf32>
    %cst_7 = arith.constant dense<0.000000e+00> : vector<8x32xf32>
    %8 = tpu.matmul %6, %7, %cst_7 {dimension_numbers = #tpu.dot_dimension_numbers<[1], [0], [0], [1], [0, 0, 1, 1], [], []>} : vector<8x32xf32>, vector<32x32xf32>, vector<8x32xf32> -> vector<8x32xf32>
    %c0_8 = arith.constant 0 : index
    %c0_9 = arith.constant 0 : index
    %9 = vector.load %arg5[%c0_8, %c0_9] : memref<1x32xf32, #tpu.memory_space<vmem>>, vector<1x32xf32>
    %10 = vector.broadcast %9 : vector<1x32xf32> to vector<8x32xf32>
    %11 = arith.addf %8, %10 : vector<8x32xf32>
    %12 = math.tanh %11 : vector<8x32xf32>
    %c0_10 = arith.constant 0 : index
    %c0_11 = arith.constant 0 : index
    %13 = vector.load %arg6[%c0_10, %c0_11] : memref<32x32xf32, #tpu.memory_space<vmem>>, vector<32x32xf32>
    %cst_12 = arith.constant dense<0.000000e+00> : vector<8x32xf32>
    %14 = tpu.matmul %12, %13, %cst_12 {dimension_numbers = #tpu.dot_dimension_numbers<[1], [0], [0], [1], [0, 0, 1, 1], [], []>} : vector<8x32xf32>, vector<32x32xf32>, vector<8x32xf32> -> vector<8x32xf32>
    %c0_13 = arith.constant 0 : index
    %c0_14 = arith.constant 0 : index
    %15 = vector.load %arg7[%c0_13, %c0_14] : memref<1x32xf32, #tpu.memory_space<vmem>>, vector<1x32xf32>
    %16 = vector.broadcast %15 : vector<1x32xf32> to vector<8x32xf32>
    %17 = arith.addf %14, %16 : vector<8x32xf32>
    %18 = math.tanh %17 : vector<8x32xf32>
    %c0_15 = arith.constant 0 : index
    %c0_16 = arith.constant 0 : index
    %19 = vector.load %arg8[%c0_15, %c0_16] : memref<32x16xf32, #tpu.memory_space<vmem>>, vector<32x16xf32>
    %cst_17 = arith.constant dense<0.000000e+00> : vector<8x16xf32>
    %20 = tpu.matmul %18, %19, %cst_17 {dimension_numbers = #tpu.dot_dimension_numbers<[1], [0], [0], [1], [0, 0, 1, 1], [], []>} : vector<8x32xf32>, vector<32x16xf32>, vector<8x16xf32> -> vector<8x16xf32>
    %c0_18 = arith.constant 0 : index
    %c0_19 = arith.constant 0 : index
    %21 = vector.load %arg9[%c0_18, %c0_19] : memref<1x16xf32, #tpu.memory_space<vmem>>, vector<1x16xf32>
    %22 = vector.broadcast %21 : vector<1x16xf32> to vector<8x16xf32>
    %23 = arith.addf %20, %22 : vector<8x16xf32>
    %c0_20 = arith.constant 0 : index
    %c0_21 = arith.constant 0 : index
    %24 = vector.load %arg10[%c0_20, %c0_21] : memref<8x16xf32, #tpu.memory_space<vmem>>, vector<8x16xf32>
    tpu.vector_store %arg10[%c0_20, %c0_21], %23 {strides = array<i32>} : memref<8x16xf32, #tpu.memory_space<vmem>>, vector<8x16xf32>,
    return
  }
  func.func @transform_0(%arg0: i32) -> (i32, i32) {
    %c0_i32 = arith.constant 0 : i32
    %c0_i32_0 = arith.constant 0 : i32
    return %arg0, %c0_i32 : i32, i32
  }
  func.func @transform_1(%arg0: i32) -> (i32, i32) {
    %c0_i32 = arith.constant 0 : i32
    %c0_i32_0 = arith.constant 0 : i32
    %c0_i32_1 = arith.constant 0 : i32
    return %c0_i32, %c0_i32_0 : i32, i32
  }
  func.func @transform_2(%arg0: i32) -> (i32, i32) {
    %c0_i32 = arith.constant 0 : i32
    %c0_i32_0 = arith.constant 0 : i32
    %c0_i32_1 = arith.constant 0 : i32
    return %c0_i32, %c0_i32_0 : i32, i32
  }
  func.func @transform_3(%arg0: i32) -> (i32, i32) {
    %c0_i32 = arith.constant 0 : i32
    %c0_i32_0 = arith.constant 0 : i32
    %c0_i32_1 = arith.constant 0 : i32
    return %c0_i32, %c0_i32_0 : i32, i32
  }
  func.func @transform_4(%arg0: i32) -> (i32, i32) {
    %c0_i32 = arith.constant 0 : i32
    %c0_i32_0 = arith.constant 0 : i32
    %c0_i32_1 = arith.constant 0 : i32
    return %c0_i32, %c0_i32_0 : i32, i32
  }
  func.func @transform_5(%arg0: i32) -> (i32, i32) {
    %c0_i32 = arith.constant 0 : i32
    %c0_i32_0 = arith.constant 0 : i32
    %c0_i32_1 = arith.constant 0 : i32
    return %c0_i32, %c0_i32_0 : i32, i32
  }
  func.func @transform_6(%arg0: i32) -> (i32, i32) {
    %c0_i32 = arith.constant 0 : i32
    %c0_i32_0 = arith.constant 0 : i32
    %c0_i32_1 = arith.constant 0 : i32
    return %c0_i32, %c0_i32_0 : i32, i32
  }
  func.func @transform_7(%arg0: i32) -> (i32, i32) {
    %c0_i32 = arith.constant 0 : i32
    %c0_i32_0 = arith.constant 0 : i32
    %c0_i32_1 = arith.constant 0 : i32
    return %c0_i32, %c0_i32_0 : i32, i32
  }
  func.func @transform_8(%arg0: i32) -> (i32, i32) {
    %c0_i32 = arith.constant 0 : i32
    %c0_i32_0 = arith.constant 0 : i32
    %c0_i32_1 = arith.constant 0 : i32
    return %c0_i32, %c0_i32_0 : i32, i32
  }
  func.func @transform_9(%arg0: i32) -> (i32, i32) {
    %c0_i32 = arith.constant 0 : i32
    %c0_i32_0 = arith.constant 0 : i32
    return %arg0, %c0_i32 : i32, i32
  }
}

</mosaic_0001>

<llo_original>
// kernel: student_network_forward.1
$region0: #{student_network_forward.1}
  #allocation0 [shape = 'u32[]', space=smem, size = 0x4, offset = 0x4, fixed_abs, tag = 'smem constant byte address 0x4 - core index']
  #allocation1 [shape = 'u32[144,128]{1,0:T(1,128)}', space=vmem, size = 0x12000, scoped, tag = 'internal scratch']
  %s0 = inlined_call_operand.vmem [shape: f32[8,32], index: 0, kind: input, shape index: {}]
  %s1 = inlined_call_operand.vmem [shape: f32[32,32], index: 1, kind: input, shape index: {}]
  %s2 = inlined_call_operand.vmem [shape: f32[1,32], index: 2, kind: input, shape index: {}]
  %s3 = inlined_call_operand.vmem [shape: f32[32,32], index: 3, kind: input, shape index: {}]
  %s4 = inlined_call_operand.vmem [shape: f32[1,32], index: 4, kind: input, shape index: {}]
  %s5 = inlined_call_operand.vmem [shape: f32[32,32], index: 5, kind: input, shape index: {}]
  %s6 = inlined_call_operand.vmem [shape: f32[1,32], index: 6, kind: input, shape index: {}]
  %s7 = inlined_call_operand.vmem [shape: f32[32,16], index: 7, kind: input, shape index: {}]
  %s8 = inlined_call_operand.vmem [shape: f32[1,16], index: 8, kind: input, shape index: {}]
  %s9 = inlined_call_operand.hbm [shape: f32[8,16], index: 9, kind: output, shape index: {}]
  %s10 = sld [smem:[#allocation0]]
  $region46: #{student_network_forward.1} parent=0
    _
  %s12 = ssub.s32 1, %s10
  %s13 = scalar_select 0, %s12, %s10
  $region1: #{student_network_forward.1} parent=0
    #allocation2 [shape = 'u8[4096]{0}', space=vmem, size = 0x1000, scoped, tag = 'output window, operand 0, single buffered']
    #allocation3 [shape = 's32[1]{0}', space=sflag, size = 0x4, scoped, tag = 'scoped memory for student_network_forward.1']
    %14 = vsyncpa [#allocation3], 0
    // Predicated region
    $region2: #{student_network_forward.1} parent=1 // pred_check
      _
    $region3: #{student_network_forward.1} parent=1 // pred_check_branch
      %16 = sbr.rel (0) target = $region5
    $region4: #{student_network_forward.1} parent=1 // pred_region
      _
    $region5: #{student_network_forward.1} parent=1 // pred_fallthru
      _
    // Predicated region
    $region6: #{student_network_forward.1} parent=1 // pred_check
      _
    $region7: #{student_network_forward.1} parent=1 // pred_check_branch
      %18 = sbr.rel (0) target = $region9
    $region8: #{student_network_forward.1} parent=1 // pred_region
      _
    $region9: #{student_network_forward.1} parent=1 // pred_fallthru
      _
    // Predicated region
    $region10: #{student_network_forward.1} parent=1 // pred_check
      _
    $region11: #{student_network_forward.1} parent=1 // pred_check_branch
      %20 = sbr.rel (0) target = $region13
    $region12: #{student_network_forward.1} parent=1 // pred_region
      _
    $region13: #{student_network_forward.1} parent=1 // pred_fallthru
      _
    // Predicated region
    $region14: #{student_network_forward.1} parent=1 // pred_check
      _
    $region15: #{student_network_forward.1} parent=1 // pred_check_branch
      %22 = sbr.rel (0) target = $region17
    $region16: #{student_network_forward.1} parent=1 // pred_region
      _
    $region17: #{student_network_forward.1} parent=1 // pred_fallthru
      _
    // Predicated region
    $region18: #{student_network_forward.1} parent=1 // pred_check
      _
    $region19: #{student_network_forward.1} parent=1 // pred_check_branch
      %24 = sbr.rel (0) target = $region21
    $region20: #{student_network_forward.1} parent=1 // pred_region
      _
    $region21: #{student_network_forward.1} parent=1 // pred_fallthru
      _
    // Predicated region
    $region22: #{student_network_forward.1} parent=1 // pred_check
      _
    $region23: #{student_network_forward.1} parent=1 // pred_check_branch
      %26 = sbr.rel (0) target = $region25
    $region24: #{student_network_forward.1} parent=1 // pred_region
      _
    $region25: #{student_network_forward.1} parent=1 // pred_fallthru
      _
    // Predicated region
    $region26: #{student_network_forward.1} parent=1 // pred_check
      _
    $region27: #{student_network_forward.1} parent=1 // pred_check_branch
      %28 = sbr.rel (0) target = $region29
    $region28: #{student_network_forward.1} parent=1 // pred_region
      _
    $region29: #{student_network_forward.1} parent=1 // pred_fallthru
      _
    // Predicated region
    $region30: #{student_network_forward.1} parent=1 // pred_check
      _
    $region31: #{student_network_forward.1} parent=1 // pred_check_branch
      %30 = sbr.rel (0) target = $region33
    $region32: #{student_network_forward.1} parent=1 // pred_region
      _
    $region33: #{student_network_forward.1} parent=1 // pred_fallthru
      _
    // Predicated region
    $region34: #{student_network_forward.1} parent=1 // pred_check
      _
    $region35: #{student_network_forward.1} parent=1 // pred_check_branch
      %32 = sbr.rel (0) target = $region37
    $region36: #{student_network_forward.1} parent=1 // pred_region
      _
    $region37: #{student_network_forward.1} parent=1 // pred_fallthru
      _
    %v33 = vld [vmem:[%s0] sm:$0xff]
    %v34 = vld [vmem:[%s1] sm:$0xff]
    %v35 = vld [vmem:[%s1 + $0x8] sm:$0xff]
    %v36 = vld [vmem:[%s1 + $0x10] sm:$0xff]
    %v37 = vld [vmem:[%s1 + $0x18] sm:$0xff]
    %v38 = vld [vmem:[%s2] sm:$0x1]
    %v40 = vlaneseq
    %v41 = vshrl.u32 %v40, 7
    %v42 = vsub.s32 0, %v41
    %v43 = vrot.slane %v38, %v42
    %vm45 = vcmask 261120
    %v47 = vsel %vm45, %v33, 0
    %49 = vmatprep.subr.mxu0 0.0
    %50 = vmatpush1.msra.mxu0 %v34
    %51 = vmatprep.subr.mxu0 0.0
    %52 = vmatpush1.msra.mxu0 %v35
    %53 = vmatprep.subr.mxu0 0.0
    %54 = vmatpush1.msra.mxu0 %v36
    %55 = vmatprep.subr.mxu0 0.0
    %56 = vmatpush1.msra.mxu0 %v37
    %57 = vmatprep.subr.mxu0 0.0
    %58 = vmatpush1.msra.mxu0 0.0
    %59 = vmatprep.subr.mxu0 0.0
    %60 = vmatpush1.msra.mxu0 0.0
    %61 = vmatprep.subr.mxu0 0.0
    %62 = vmatpush1.msra.mxu0 0.0
    %63 = vmatprep.subr.mxu0 0.0
    %64 = vmatpush1.msra.mxu0 0.0
    %65 = vmatprep.subr.mxu0 0.0
    %66 = vmatpush1.msra.mxu0 0.0
    %67 = vmatprep.subr.mxu0 0.0
    %68 = vmatpush1.msra.mxu0 0.0
    %69 = vmatprep.subr.mxu0 0.0
    %70 = vmatpush1.msra.mxu0 0.0
    %71 = vmatprep.subr.mxu0 0.0
    %72 = vmatpush1.msra.mxu0 0.0
    %73 = vmatprep.subr.mxu0 0.0
    %74 = vmatpush1.msra.mxu0 0.0
    %75 = vmatprep.subr.mxu0 0.0
    %76 = vmatpush1.msra.mxu0 0.0
    %77 = vmatprep.subr.mxu0 0.0
    %78 = vmatpush1.msra.mxu0 0.0
    %79 = vmatprep.subr.mxu0 0.0
    %80 = vmatpush1.msra.mxu0 0.0
    %81 = vmatprep.subr.mxu0 0.0
    %82 = vmatpush1.msra.mxu0 0.0
    %83 = vmatprep.subr.mxu0 0.0
    %84 = vmatpush1.msra.mxu0 0.0
    %85 = vmatprep.subr.mxu0 0.0
    %86 = vmatpush1.msra.mxu0 0.0
    %87 = vmatprep.subr.mxu0 0.0
    %88 = vmatpush1.msra.mxu0 0.0
    %89 = vmatprep.subr.mxu0 0.0
    %90 = vmatpush1.msra.mxu0 0.0
    %91 = vmatprep.subr.mxu0 0.0
    %92 = vmatpush1.msra.mxu0 0.0
    %93 = vmatprep.subr.mxu0 0.0
    %94 = vmatpush1.msra.mxu0 0.0
    %95 = vmatprep.subr.mxu0 0.0
    %96 = vmatpush1.msra.mxu0 0.0
    %97 = vmatprep.subr.mxu0 0.0
    %98 = vmatpush1.msra.mxu0 0.0
    %99 = vmatprep.subr.mxu0 0.0
    %100 = vmatpush1.msra.mxu0 0.0
    %101 = vmatprep.subr.mxu0 0.0
    %102 = vmatpush1.msra.mxu0 0.0
    %103 = vmatprep.subr.mxu0 0.0
    %104 = vmatpush1.msra.mxu0 0.0
    %105 = vmatprep.subr.mxu0 0.0
    %106 = vmatpush1.msra.mxu0 0.0
    %107 = vmatprep.subr.mxu0 0.0
    %108 = vmatpush1.msra.mxu0 0.0
    %109 = vmatprep.subr.mxu0 0.0
    %110 = vmatpush1.msra.mxu0 0.0
    %111 = vmatprep.subr.mxu0 0.0
    %112 = vmatpush1.msra.mxu0 0.0
    %113 = vmatprep.mubr.f32.mxu0 0.0
    %114 = vmatmul.mubr.f32.gmra.mrb[0].mxu0 %v47
    %v115 = vpop.f32.mrb[0].mxu0
    %v116 = vadd.f32 %v43, %v115
    %v117 = vpop.f32.mrb[0].mxu0
    %118 = vdwg.mxu0
    %v119 = vtanh.pop %v116
    %v120 = vld [vmem:[%s3] sm:$0xff]
    %v121 = vld [vmem:[%s3 + $0x8] sm:$0xff]
    %v122 = vld [vmem:[%s3 + $0x10] sm:$0xff]
    %v123 = vld [vmem:[%s3 + $0x18] sm:$0xff]
    %v124 = vld [vmem:[%s4] sm:$0x1]
    %v126 = vlaneseq
    %v127 = vshrl.u32 %v126, 7
    %v128 = vsub.s32 0, %v127
    %v129 = vrot.slane %v124, %v128
    %v132 = vsel %vm45, %v119, 0
    %134 = vmatprep.subr.mxu0 0.0
    %135 = vmatpush1.msra.mxu0 %v120
    %136 = vmatprep.subr.mxu0 0.0
    %137 = vmatpush1.msra.mxu0 %v121
    %138 = vmatprep.subr.mxu0 0.0
    %139 = vmatpush1.msra.mxu0 %v122
    %140 = vmatprep.subr.mxu0 0.0
    %141 = vmatpush1.msra.mxu0 %v123
    %142 = vmatprep.subr.mxu0 0.0
    %143 = vmatpush1.msra.mxu0 0.0
    %144 = vmatprep.subr.mxu0 0.0
    %145 = vmatpush1.msra.mxu0 0.0
    %146 = vmatprep.subr.mxu0 0.0
    %147 = vmatpush1.msra.mxu0 0.0
    %148 = vmatprep.subr.mxu0 0.0
    %149 = vmatpush1.msra.mxu0 0.0
    %150 = vmatprep.subr.mxu0 0.0
    %151 = vmatpush1.msra.mxu0 0.0
    %152 = vmatprep.subr.mxu0 0.0
    %153 = vmatpush1.msra.mxu0 0.0
    %154 = vmatprep.subr.mxu0 0.0
    %155 = vmatpush1.msra.mxu0 0.0
    %156 = vmatprep.subr.mxu0 0.0
    %157 = vmatpush1.msra.mxu0 0.0
    %158 = vmatprep.subr.mxu0 0.0
    %159 = vmatpush1.msra.mxu0 0.0
    %160 = vmatprep.subr.mxu0 0.0
    %161 = vmatpush1.msra.mxu0 0.0
    %162 = vmatprep.subr.mxu0 0.0
    %163 = vmatpush1.msra.mxu0 0.0
    %164 = vmatprep.subr.mxu0 0.0
    %165 = vmatpush1.msra.mxu0 0.0
    %166 = vmatprep.subr.mxu0 0.0
    %167 = vmatpush1.msra.mxu0 0.0
    %168 = vmatprep.subr.mxu0 0.0
    %169 = vmatpush1.msra.mxu0 0.0
    %170 = vmatprep.subr.mxu0 0.0
    %171 = vmatpush1.msra.mxu0 0.0
    %172 = vmatprep.subr.mxu0 0.0
    %173 = vmatpush1.msra.mxu0 0.0
    %174 = vmatprep.subr.mxu0 0.0
    %175 = vmatpush1.msra.mxu0 0.0
    %176 = vmatprep.subr.mxu0 0.0
    %177 = vmatpush1.msra.mxu0 0.0
    %178 = vmatprep.subr.mxu0 0.0
    %179 = vmatpush1.msra.mxu0 0.0
    %180 = vmatprep.subr.mxu0 0.0
    %181 = vmatpush1.msra.mxu0 0.0
    %182 = vmatprep.subr.mxu0 0.0
    %183 = vmatpush1.msra.mxu0 0.0
    %184 = vmatprep.subr.mxu0 0.0
    %185 = vmatpush1.msra.mxu0 0.0
    %186 = vmatprep.subr.mxu0 0.0
    %187 = vmatpush1.msra.mxu0 0.0
    %188 = vmatprep.subr.mxu0 0.0
    %189 = vmatpush1.msra.mxu0 0.0
    %190 = vmatprep.subr.mxu0 0.0
    %191 = vmatpush1.msra.mxu0 0.0
    %192 = vmatprep.subr.mxu0 0.0
    %193 = vmatpush1.msra.mxu0 0.0
    %194 = vmatprep.subr.mxu0 0.0
    %195 = vmatpush1.msra.mxu0 0.0
    %196 = vmatprep.subr.mxu0 0.0
    %197 = vmatpush1.msra.mxu0 0.0
    %198 = vmatprep.mubr.f32.mxu0 0.0
    %199 = vmatmul.mubr.f32.gmra.mrb[0].mxu0 %v132
    %v200 = vpop.f32.mrb[0].mxu0
    %v201 = vadd.f32 %v129, %v200
    %v202 = vpop.f32.mrb[0].mxu0
    %203 = vdwg.mxu0
    %v204 = vtanh.pop %v201
    %v205 = vld [vmem:[%s5] sm:$0xff]
    %v206 = vld [vmem:[%s5 + $0x8] sm:$0xff]
    %v207 = vld [vmem:[%s5 + $0x10] sm:$0xff]
    %v208 = vld [vmem:[%s5 + $0x18] sm:$0xff]
    %v209 = vld [vmem:[%s6] sm:$0x1]
    %v211 = vlaneseq
    %v212 = vshrl.u32 %v211, 7
    %v213 = vsub.s32 0, %v212
    %v214 = vrot.slane %v209, %v213
    %v217 = vsel %vm45, %v204, 0
    %219 = vmatprep.subr.mxu0 0.0
    %220 = vmatpush1.msra.mxu0 %v205
    %221 = vmatprep.subr.mxu0 0.0
    %222 = vmatpush1.msra.mxu0 %v206
    %223 = vmatprep.subr.mxu0 0.0
    %224 = vmatpush1.msra.mxu0 %v207
    %225 = vmatprep.subr.mxu0 0.0
    %226 = vmatpush1.msra.mxu0 %v208
    %227 = vmatprep.subr.mxu0 0.0
    %228 = vmatpush1.msra.mxu0 0.0
    %229 = vmatprep.subr.mxu0 0.0
    %230 = vmatpush1.msra.mxu0 0.0
    %231 = vmatprep.subr.mxu0 0.0
    %232 = vmatpush1.msra.mxu0 0.0
    %233 = vmatprep.subr.mxu0 0.0
    %234 = vmatpush1.msra.mxu0 0.0
    %235 = vmatprep.subr.mxu0 0.0
    %236 = vmatpush1.msra.mxu0 0.0
    %237 = vmatprep.subr.mxu0 0.0
    %238 = vmatpush1.msra.mxu0 0.0
    %239 = vmatprep.subr.mxu0 0.0
    %240 = vmatpush1.msra.mxu0 0.0
    %241 = vmatprep.subr.mxu0 0.0
    %242 = vmatpush1.msra.mxu0 0.0
    %243 = vmatprep.subr.mxu0 0.0
    %244 = vmatpush1.msra.mxu0 0.0
    %245 = vmatprep.subr.mxu0 0.0
    %246 = vmatpush1.msra.mxu0 0.0
    %247 = vmatprep.subr.mxu0 0.0
    %248 = vmatpush1.msra.mxu0 0.0
    %249 = vmatprep.subr.mxu0 0.0
    %250 = vmatpush1.msra.mxu0 0.0
    %251 = vmatprep.subr.mxu0 0.0
    %252 = vmatpush1.msra.mxu0 0.0
    %253 = vmatprep.subr.mxu0 0.0
    %254 = vmatpush1.msra.mxu0 0.0
    %255 = vmatprep.subr.mxu0 0.0
    %256 = vmatpush1.msra.mxu0 0.0
    %257 = vmatprep.subr.mxu0 0.0
    %258 = vmatpush1.msra.mxu0 0.0
    %259 = vmatprep.subr.mxu0 0.0
    %260 = vmatpush1.msra.mxu0 0.0
    %261 = vmatprep.subr.mxu0 0.0
    %262 = vmatpush1.msra.mxu0 0.0
    %263 = vmatprep.subr.mxu0 0.0
    %264 = vmatpush1.msra.mxu0 0.0
    %265 = vmatprep.subr.mxu0 0.0
    %266 = vmatpush1.msra.mxu0 0.0
    %267 = vmatprep.subr.mxu0 0.0
    %268 = vmatpush1.msra.mxu0 0.0
    %269 = vmatprep.subr.mxu0 0.0
    %270 = vmatpush1.msra.mxu0 0.0
    %271 = vmatprep.subr.mxu0 0.0
    %272 = vmatpush1.msra.mxu0 0.0
    %273 = vmatprep.subr.mxu0 0.0
    %274 = vmatpush1.msra.mxu0 0.0
    %275 = vmatprep.subr.mxu0 0.0
    %276 = vmatpush1.msra.mxu0 0.0
    %277 = vmatprep.subr.mxu0 0.0
    %278 = vmatpush1.msra.mxu0 0.0
    %279 = vmatprep.subr.mxu0 0.0
    %280 = vmatpush1.msra.mxu0 0.0
    %281 = vmatprep.subr.mxu0 0.0
    %282 = vmatpush1.msra.mxu0 0.0
    %283 = vmatprep.mubr.f32.mxu0 0.0
    %284 = vmatmul.mubr.f32.gmra.mrb[0].mxu0 %v217
    %v285 = vpop.f32.mrb[0].mxu0
    %v286 = vadd.f32 %v214, %v285
    %v287 = vpop.f32.mrb[0].mxu0
    %288 = vdwg.mxu0
    %v289 = vtanh.pop %v286
    %v290 = vld [vmem:[%s7] sm:$0xff]
    %v291 = vld [vmem:[%s7 + $0x8] sm:$0xff]
    %v292 = vld [vmem:[%s7 + $0x10] sm:$0xff]
    %v293 = vld [vmem:[%s7 + $0x18] sm:$0xff]
    %v294 = vld [vmem:[%s8] sm:$0x1]
    %v296 = vlaneseq
    %v297 = vshrl.u32 %v296, 7
    %v298 = vsub.s32 0, %v297
    %v299 = vrot.slane %v294, %v298
    %v302 = vsel %vm45, %v289, 0
    %304 = vmatprep.subr.mxu0 0.0
    %305 = vmatpush1.msra.mxu0 %v290
    %306 = vmatprep.subr.mxu0 0.0
    %307 = vmatpush1.msra.mxu0 %v291
    %308 = vmatprep.subr.mxu0 0.0
    %309 = vmatpush1.msra.mxu0 %v292
    %310 = vmatprep.subr.mxu0 0.0
    %311 = vmatpush1.msra.mxu0 %v293
    %312 = vmatprep.subr.mxu0 0.0
    %313 = vmatpush1.msra.mxu0 0.0
    %314 = vmatprep.subr.mxu0 0.0
    %315 = vmatpush1.msra.mxu0 0.0
    %316 = vmatprep.subr.mxu0 0.0
    %317 = vmatpush1.msra.mxu0 0.0
    %318 = vmatprep.subr.mxu0 0.0
    %319 = vmatpush1.msra.mxu0 0.0
    %320 = vmatprep.subr.mxu0 0.0
    %321 = vmatpush1.msra.mxu0 0.0
    %322 = vmatprep.subr.mxu0 0.0
    %323 = vmatpush1.msra.mxu0 0.0
    %324 = vmatprep.subr.mxu0 0.0
    %325 = vmatpush1.msra.mxu0 0.0
    %326 = vmatprep.subr.mxu0 0.0
    %327 = vmatpush1.msra.mxu0 0.0
    %328 = vmatprep.subr.mxu0 0.0
    %329 = vmatpush1.msra.mxu0 0.0
    %330 = vmatprep.subr.mxu0 0.0
    %331 = vmatpush1.msra.mxu0 0.0
    %332 = vmatprep.subr.mxu0 0.0
    %333 = vmatpush1.msra.mxu0 0.0
    %334 = vmatprep.subr.mxu0 0.0
    %335 = vmatpush1.msra.mxu0 0.0
    %336 = vmatprep.subr.mxu0 0.0
    %337 = vmatpush1.msra.mxu0 0.0
    %338 = vmatprep.subr.mxu0 0.0
    %339 = vmatpush1.msra.mxu0 0.0
    %340 = vmatprep.subr.mxu0 0.0
    %341 = vmatpush1.msra.mxu0 0.0
    %342 = vmatprep.subr.mxu0 0.0
    %343 = vmatpush1.msra.mxu0 0.0
    %344 = vmatprep.subr.mxu0 0.0
    %345 = vmatpush1.msra.mxu0 0.0
    %346 = vmatprep.subr.mxu0 0.0
    %347 = vmatpush1.msra.mxu0 0.0
    %348 = vmatprep.subr.mxu0 0.0
    %349 = vmatpush1.msra.mxu0 0.0
    %350 = vmatprep.subr.mxu0 0.0
    %351 = vmatpush1.msra.mxu0 0.0
    %352 = vmatprep.subr.mxu0 0.0
    %353 = vmatpush1.msra.mxu0 0.0
    %354 = vmatprep.subr.mxu0 0.0
    %355 = vmatpush1.msra.mxu0 0.0
    %356 = vmatprep.subr.mxu0 0.0
    %357 = vmatpush1.msra.mxu0 0.0
    %358 = vmatprep.subr.mxu0 0.0
    %359 = vmatpush1.msra.mxu0 0.0
    %360 = vmatprep.subr.mxu0 0.0
    %361 = vmatpush1.msra.mxu0 0.0
    %362 = vmatprep.subr.mxu0 0.0
    %363 = vmatpush1.msra.mxu0 0.0
    %364 = vmatprep.subr.mxu0 0.0
    %365 = vmatpush1.msra.mxu0 0.0
    %366 = vmatprep.subr.mxu0 0.0
    %367 = vmatpush1.msra.mxu0 0.0
    %368 = vmatprep.mubr.f32.mxu0 0.0
    %369 = vmatmul.mubr.f32.gmra.mrb[0].mxu0 %v302
    %v370 = vpop.f32.mrb[0].mxu0
    %v371 = vadd.f32 %v299, %v370
    %v372 = vpop.f32.mrb[0].mxu0
    %373 = vdwg.mxu0
    %vm374 = vcmask 130048
    %375 = vst.msk [vmem:[#allocation2] sm:$0xff] %vm374, %v371
    // Predicated region
    $region38: #{student_network_forward.1} parent=1 // pred_check
      _
    $region39: #{student_network_forward.1} parent=1 // pred_check_branch
      %377 = sbr.rel (0) target = $region41
    $region40: #{student_network_forward.1} parent=1 // pred_region
      %s379 = ssub.s32 128, 128
      %380 = vsyncadd [#allocation3], %s379
      %s382 = sshll.u32 [#allocation2], 4
      %s383 = int_to_ptr.vmem [resolvable:$true] %s382
      %385 = dma.vmem_to_hbm [thread:$0]  %s383, 128, %s9, [#allocation3]
    $region41: #{student_network_forward.1} parent=1 // pred_fallthru
      _
    // Predicated region
    $region42: #{student_network_forward.1} parent=1 // pred_check
      _
    $region43: #{student_network_forward.1} parent=1 // pred_check_branch
      %387 = sbr.rel (0) target = $region45
    $region44: #{student_network_forward.1} parent=1 // pred_region
      %388 = dma.done [#allocation3], 128
    $region45: #{student_network_forward.1} parent=1 // pred_fallthru
      _
    %389 = vsyncpa [#allocation3], 1

</llo_original>
